<compile_context>
chip_gen: v7x
topology: tpu7x:2x2x1
jax: 0.10.0
libtpu: 0.0.40
codegen_flags: <defaults>
</compile_context>

<pallas_src>
import jax
import jax.numpy as jnp
from jax.experimental import pallas as pl
from jax.experimental.pallas import tpu as pltpu

_LANE = 128
_SUBLANE = 8


def _round_up(v, m):
    return ((v + m - 1) // m) * m


def _cdiv(a, b):
    return -(-a // b)


def _head_kernel(x_ref, w_emb_ref, w_arc_ref, cos_ref, embn_ref, embn_acc):
    """Grid = (batch_tiles, class_tiles); class axis innermost / "arbitrary".

    x_ref:      [TB, Hp]       input batch tile
    w_emb_ref:  [Hp, Ep]       embedding weight (pre-transposed, padded; resident)
    w_arc_ref:  [k*TC, Ep]     pre-normalized arc weights for this class tile,
                               rows grouped as k consecutive TC-wide sub-blocks
    cos_ref:    [TB, TC]       output cosine tile
    embn_ref:   [TB, Ep]  f32  output normalized embedding (block-resident per b)
    embn_acc:   [TB, Ep]       VMEM scratch in matmul dtype, resident across c
    """
    # Embedding + L2 normalize: only on the first class tile of each batch tile.
    @pl.when(pl.program_id(1) == 0)
    def _():
        x = x_ref[...].astype(w_emb_ref.dtype)
        emb = jnp.dot(x, w_emb_ref[...],
                      preferred_element_type=jnp.float32)            # [TB, Ep]
        sumsq = jnp.sum(emb * emb, axis=-1, keepdims=True)
        # F.normalize: x / max(||x||, 1e-12) == x * rsqrt(max(||x||^2, 1e-24))
        emb_n = emb * jax.lax.rsqrt(jnp.maximum(sumsq, 1e-24))        # EUP rsqrt
        embn_ref[...] = emb_n.astype(embn_ref.dtype)                  # f32 output
        embn_acc[...] = emb_n.astype(embn_acc.dtype)                  # cast once

    # One fused MXU matmul over all k sub-centers for this class tile.
    contract_last = (((1,), (1,)), ((), ()))          # [TB,E]·[k*TC,E]^T
    cos_all = jax.lax.dot_general(embn_acc[...], w_arc_ref[...], contract_last,
                                  preferred_element_type=jnp.float32)  # [TB,k*TC]
    tc = cos_ref.shape[-1]
    ksub = w_arc_ref.shape[0] // tc                   # static (k)
    cos = cos_all[:, :tc]
    for j in range(1, ksub):                          # lane-aligned column slices
        cos = jnp.maximum(cos, cos_all[:, j * tc:(j + 1) * tc])
    cos_ref[...] = cos.astype(cos_ref.dtype)


def prepare_head_weights(w_emb, w_arc, *, k=3, class_tile=1024,
                         weight_dtype=jnp.bfloat16,
                         arc_vmem_budget=24 << 20):
    """One-time weight preprocessing (call once, reuse across forward calls).

    w_emb: [emb_size, hidden]     (torch nn.Linear layout)
    w_arc: [n_classes * k, emb]   (torch layout, row index = class * k + sub)
    """
    E, H = w_emb.shape
    Ck, E2 = w_arc.shape
    assert E2 == E and Ck % k == 0
    C = Ck // k
    w_dtype = jnp.dtype(weight_dtype)

    H_pad = _round_up(H, _LANE)
    E_pad = _round_up(E, _LANE)

    # Class tile: lane-dense multiple of 128, sized so the double-buffered
    # [k*TC, E_pad] w_arc stream stays under the budget (safe on 64 MiB VMEM).
    tc_cap = max(_LANE,
                 (arc_vmem_budget // (2 * k * E_pad * w_dtype.itemsize))
                 // _LANE * _LANE)
    TC = min(_round_up(class_tile, _LANE), _round_up(C, _LANE), tc_cap)
    C_pad = _round_up(C, TC)
    n_ct = C_pad // TC

    # emb weight pre-transposed to [H, E], zero-padded.
    w_emb_t = jnp.zeros((H_pad, E_pad), w_dtype)
    w_emb_t = w_emb_t.at[:H, :E].set(jnp.transpose(w_emb).astype(w_dtype))

    # arc weight: regroup to [k, C, E] (torch row class*k + sub), pre-normalize
    # each row in f32 (folds F.normalize(weight) into the stored weights), pad,
    # then re-layout class-tile-major so each kernel block is one contiguous
    # [k*TC, E_pad] slab (rows ordered: tile -> sub-center -> class-in-tile).
    w_grp = jnp.transpose(w_arc.reshape(C, k, E), (1, 0, 2)).astype(jnp.float32)
    norms = jnp.sqrt(jnp.sum(w_grp * w_grp, axis=-1, keepdims=True))
    w_grp = w_grp / jnp.maximum(norms, 1e-12)

    w_pad = jnp.zeros((k, C_pad, E_pad), jnp.float32)
    w_pad = w_pad.at[:, :C, :E].set(w_grp)
    w_arc_r = (w_pad.reshape(k, n_ct, TC, E_pad)
                    .transpose(1, 0, 2, 3)
                    .reshape(n_ct * k * TC, E_pad)
                    .astype(w_dtype))

    return {
        "w_emb_t": w_emb_t, "w_arc_r": w_arc_r,
        "k": k, "H": H, "E": E, "C": C,
        "H_pad": H_pad, "E_pad": E_pad, "C_pad": C_pad, "TC": TC,
    }


def head_forward(x, params, *, batch_tile=256, cos_dtype=jnp.float32):
    """x: [B, hidden]. Returns (cosine [B, n_classes], emb_n [B, emb] f32)."""
    B, H = x.shape
    assert H == params["H"], "hidden size mismatch with prepared weights"
    k = params["k"]
    H_pad, E_pad, C_pad, TC = (params[s] for s in ("H_pad", "E_pad", "C_pad", "TC"))
    E, C = params["E"], params["C"]
    w_emb_t, w_arc_r = params["w_emb_t"], params["w_arc_r"]

    # Balanced batch tiling: n_bt tiles of (roughly) batch_tile rows; larger TB
    # means fewer full w_arc HBM re-streams (the kernel is w_arc-BW-bound).
    B_sub = _round_up(B, _SUBLANE)
    TB_req = max(_SUBLANE, _round_up(min(batch_tile, B_sub), _SUBLANE))
    n_bt = max(1, _cdiv(B_sub, TB_req))
    TB = _round_up(_cdiv(B_sub, n_bt), _SUBLANE)
    B_pad = n_bt * TB

    x_p = jnp.zeros((B_pad, H_pad), x.dtype).at[:B, :H].set(x)

    grid = (B_pad // TB, C_pad // TC)

    x_itm = jnp.dtype(x.dtype).itemsize
    w_itm = jnp.dtype(w_arc_r.dtype).itemsize
    cos_itm = jnp.dtype(cos_dtype).itemsize

    # Double-buffered block traffic + resident scratch, for vmem_limit_bytes.
    # (w_emb is grid-constant; pipeline_mode=pl.Buffered(1) would halve its
    #  footprint, left at the default double-buffer for robustness.)
    vmem_bytes = (2 * TB * H_pad * x_itm
                  + 2 * H_pad * E_pad * w_itm
                  + 2 * k * TC * E_pad * w_itm
                  + 2 * TB * TC * cos_itm
                  + 2 * TB * E_pad * 4
                  + TB * E_pad * w_itm)
    # Cap well below v7x's 64 MiB physical VMEM to leave compiler headroom.
    vmem_limit = int(min(max(1.25 * vmem_bytes + (1 << 20), 16 << 20), 56 << 20))

    n_btiles = B_pad // TB
    cost = pl.CostEstimate(
        flops=2 * B_pad * H_pad * E_pad + 2 * k * B_pad * E_pad * C_pad,
        transcendentals=B_pad,
        bytes_accessed=(x_p.size * x_itm
                        + w_emb_t.size * w_itm
                        + n_btiles * w_arc_r.size * w_itm   # re-streamed per b-tile
                        + B_pad * C_pad * cos_itm
                        + B_pad * E_pad * 4),
    )

    cos_pad, embn_pad = pl.pallas_call(
        _head_kernel,
        out_shape=(
            jax.ShapeDtypeStruct((B_pad, C_pad), cos_dtype),
            jax.ShapeDtypeStruct((B_pad, E_pad), jnp.float32),
        ),
        grid=grid,
        in_specs=[
            pl.BlockSpec((TB, H_pad), lambda b, c: (b, 0)),        # x batch tile
            pl.BlockSpec((H_pad, E_pad), lambda b, c: (0, 0)),     # w_emb^T (resident)
            pl.BlockSpec((k * TC, E_pad), lambda b, c: (c, 0)),    # fused w_arc stream
        ],
        out_specs=(
            pl.BlockSpec((TB, TC), lambda b, c: (b, c)),           # cosine tile
            pl.BlockSpec((TB, E_pad), lambda b, c: (b, 0)),        # emb_n (resident)
        ),
        scratch_shapes=[pltpu.VMEM((TB, E_pad), w_arc_r.dtype)],   # matmul-dtype emb
        compiler_params=pltpu.CompilerParams(
            dimension_semantics=("parallel", "arbitrary"),
            vmem_limit_bytes=vmem_limit,
        ),
        cost_estimate=cost,
    )(x_p, w_emb_t, w_arc_r)

    return cos_pad[:B, :C], embn_pad[:B, :E]


def _head_reference(x, w_emb, w_arc, k):
    """Pure-JAX eval-mode reference matching the PyTorch module."""
    emb = x.astype(jnp.float32) @ w_emb.astype(jnp.float32).T
    emb_n = emb / jnp.maximum(jnp.linalg.norm(emb, axis=1, keepdims=True), 1e-12)
    w_n = w_arc.astype(jnp.float32)
    w_n = w_n / jnp.maximum(jnp.linalg.norm(w_n, axis=1, keepdims=True), 1e-12)
    cos_all = emb_n @ w_n.T                                  # [B, C*k]
    cos = cos_all.reshape(x.shape[0], -1, k).max(axis=2)     # max over subcenters
    return cos, emb_n


if __name__ == "__main__":
    # Small shapes consistent with Head(hidden_size, emb_size, n_classes).
    B, HIDDEN, EMB, N_CLASSES, K = 8, 32, 64, 16, 3

    key = jax.random.PRNGKey(0)
    kx, ke, ka = jax.random.split(key, 3)

    x = jax.random.normal(kx, (B, HIDDEN), dtype=jnp.float32)

    # nn.Linear(hidden, emb, bias=False): uniform(-1/sqrt(hidden), 1/sqrt(hidden))
    emb_bound = 1.0 / (HIDDEN ** 0.5)
    w_emb = jax.random.uniform(ke, (EMB, HIDDEN), jnp.float32,
                               minval=-emb_bound, maxval=emb_bound)
    # ArcMarginProduct_subcenter: uniform(-stdv, stdv), stdv = 1/sqrt(emb)
    arc_bound = 1.0 / (EMB ** 0.5)
    w_arc = jax.random.uniform(ka, (N_CLASSES * K, EMB), jnp.float32,
                               minval=-arc_bound, maxval=arc_bound)

    cos_ref, embn_ref = _head_reference(x, w_emb, w_arc, K)

    # f32 weight-streaming path (tight numerical check).
    params_f32 = prepare_head_weights(w_emb, w_arc, k=K, weight_dtype=jnp.float32)
    cosine, emb_normed = head_forward(x, params_f32)
    jax.block_until_ready((cosine, emb_normed))
    assert cosine.shape == (B, N_CLASSES)
    assert emb_normed.shape == (B, EMB)
    assert jnp.allclose(cosine, cos_ref, atol=2e-2, rtol=2e-2), (
        float(jnp.max(jnp.abs(cosine - cos_ref))))
    assert jnp.allclose(emb_normed, embn_ref, atol=2e-2, rtol=2e-2), (
        float(jnp.max(jnp.abs(emb_normed - embn_ref))))

    # Default path: bf16 weight streaming (halves w_arc HBM bytes), f32 acc.
    params = prepare_head_weights(w_emb, w_arc, k=K)
    cos_b, embn_b = head_forward(x, params)
    jax.block_until_ready((cos_b, embn_b))
    assert cos_b.shape == (B, N_CLASSES) and embn_b.shape == (B, EMB)
    assert jnp.allclose(cos_b, cos_ref, atol=5e-2, rtol=5e-2), (
        float(jnp.max(jnp.abs(cos_b - cos_ref))))
    assert jnp.allclose(embn_b, embn_ref, atol=5e-2, rtol=5e-2), (
        float(jnp.max(jnp.abs(embn_b - embn_ref))))

    print("KERNEL_OK")
</pallas_src>

<mosaic_0001>
module attributes {stable_mosaic.version = 11 : i64} {
  func.func @_head_kernel(%arg0: i32, %arg1: i32, %arg2: memref<8x128xf32, #tpu.memory_space<vmem>>, %arg3: memref<128x128xf32, #tpu.memory_space<vmem>>, %arg4: memref<384x128xf32, #tpu.memory_space<vmem>>, %arg5: memref<8x128xf32, #tpu.memory_space<vmem>>, %arg6: memref<8x128xf32, #tpu.memory_space<vmem>>, %arg7: memref<8x128xf32, #tpu.memory_space<vmem>>) attributes {dimension_semantics = [#tpu.dimension_semantics<parallel>, #tpu.dimension_semantics<arbitrary>], iteration_bounds = array<i64: 1, 1>, scalar_prefetch = 0 : i64, scratch_operands = 1 : i64, tpu.core_type = #tpu.core_type<tc>, window_params = [{transform_indices = @transform_0, window_bounds = array<i64: 8, 128>}, {pipeline_mode = #tpu.pipeline_mode<synchronous>, transform_indices = @transform_1, window_bounds = array<i64: 128, 128>}, {transform_indices = @transform_2, window_bounds = array<i64: 384, 128>}, {transform_indices = @transform_3, window_bounds = array<i64: 8, 128>}, {transform_indices = @transform_4, window_bounds = array<i64: 8, 128>}]} {
    %c0_i32 = arith.constant 0 : i32
    %0 = arith.cmpi eq, %arg1, %c0_i32 : i32
    %1 = arith.extui %0 : i1 to i32
    %c0_i32_0 = arith.constant 0 : i32
    %2 = arith.cmpi ne, %1, %c0_i32_0 : i32
    scf.if %2 {
      %c0_6 = arith.constant 0 : index
      %c0_7 = arith.constant 0 : index
      %12 = vector.load %arg2[%c0_6, %c0_7] : memref<8x128xf32, #tpu.memory_space<vmem>>, vector<8x128xf32>
      %c0_8 = arith.constant 0 : index
      %c0_9 = arith.constant 0 : index
      %13 = vector.load %arg3[%c0_8, %c0_9] : memref<128x128xf32, #tpu.memory_space<vmem>>, vector<128x128xf32>
      %cst_10 = arith.constant dense<0.000000e+00> : vector<8x128xf32>
      %14 = tpu.matmul %12, %13, %cst_10 {dimension_numbers = #tpu.dot_dimension_numbers<[1], [0], [0], [1], [0, 0, 1, 1], [], []>} : vector<8x128xf32>, vector<128x128xf32>, vector<8x128xf32> -> vector<8x128xf32>
      %15 = arith.mulf %14, %14 : vector<8x128xf32>
      %cst_11 = arith.constant dense<0.000000e+00> : vector<8xf32>
      %16 = vector.multi_reduction <add>, %15, %cst_11 [1] : vector<8x128xf32> to vector<8xf32>
      %17 = vector.shape_cast %16 : vector<8xf32> to vector<8x1xf32>
      %cst_12 = arith.constant 1.000000e-24 : f32
      %18 = vector.broadcast %cst_12 : f32 to vector<8x1xf32>
      %19 = arith.maximumf %17, %18 : vector<8x1xf32>
      %20 = math.rsqrt %19 : vector<8x1xf32>
      %21 = vector.broadcast %20 : vector<8x1xf32> to vector<8x128xf32>
      %22 = arith.mulf %14, %21 : vector<8x128xf32>
      %c0_13 = arith.constant 0 : index
      %c0_14 = arith.constant 0 : index
      %23 = vector.load %arg6[%c0_13, %c0_14] : memref<8x128xf32, #tpu.memory_space<vmem>>, vector<8x128xf32>
      tpu.vector_store %arg6[%c0_13, %c0_14], %22 {strides = array<i32>} : memref<8x128xf32, #tpu.memory_space<vmem>>, vector<8x128xf32>,
      %c0_15 = arith.constant 0 : index
      %c0_16 = arith.constant 0 : index
      %24 = vector.load %arg7[%c0_15, %c0_16] : memref<8x128xf32, #tpu.memory_space<vmem>>, vector<8x128xf32>
      tpu.vector_store %arg7[%c0_15, %c0_16], %22 {strides = array<i32>} : memref<8x128xf32, #tpu.memory_space<vmem>>, vector<8x128xf32>,
    } else {
    }
    %c0 = arith.constant 0 : index
    %c0_1 = arith.constant 0 : index
    %3 = vector.load %arg7[%c0, %c0_1] : memref<8x128xf32, #tpu.memory_space<vmem>>, vector<8x128xf32>
    %c0_2 = arith.constant 0 : index
    %c0_3 = arith.constant 0 : index
    %4 = vector.load %arg4[%c0_2, %c0_3] : memref<384x128xf32, #tpu.memory_space<vmem>>, vector<384x128xf32>
    %cst = arith.constant dense<0.000000e+00> : vector<8x384xf32>
    %5 = tpu.matmul %3, %4, %cst {dimension_numbers = #tpu.dot_dimension_numbers<[1], [1], [0], [0], [0, 0, 1, 0], [], []>} : vector<8x128xf32>, vector<384x128xf32>, vector<8x384xf32> -> vector<8x384xf32>
    %6 = vector.extract_strided_slice %5 {offsets = [0, 0], sizes = [8, 128], strides = [1, 1]} : vector<8x384xf32> to vector<8x128xf32>
    %7 = vector.extract_strided_slice %5 {offsets = [0, 128], sizes = [8, 128], strides = [1, 1]} : vector<8x384xf32> to vector<8x128xf32>
    %8 = arith.maximumf %6, %7 : vector<8x128xf32>
    %9 = vector.extract_strided_slice %5 {offsets = [0, 256], sizes = [8, 128], strides = [1, 1]} : vector<8x384xf32> to vector<8x128xf32>
    %10 = arith.maximumf %8, %9 : vector<8x128xf32>
    %c0_4 = arith.constant 0 : index
    %c0_5 = arith.constant 0 : index
    %11 = vector.load %arg5[%c0_4, %c0_5] : memref<8x128xf32, #tpu.memory_space<vmem>>, vector<8x128xf32>
    tpu.vector_store %arg5[%c0_4, %c0_5], %10 {strides = array<i32>} : memref<8x128xf32, #tpu.memory_space<vmem>>, vector<8x128xf32>,
    return
  }
  func.func @transform_0(%arg0: i32, %arg1: i32) -> (i32, i32) {
    %c0_i32 = arith.constant 0 : i32
    %c0_i32_0 = arith.constant 0 : i32
    return %arg0, %c0_i32 : i32, i32
  }
  func.func @transform_1(%arg0: i32, %arg1: i32) -> (i32, i32) {
    %c0_i32 = arith.constant 0 : i32
    %c0_i32_0 = arith.constant 0 : i32
    %c0_i32_1 = arith.constant 0 : i32
    return %c0_i32, %c0_i32_0 : i32, i32
  }
  func.func @transform_2(%arg0: i32, %arg1: i32) -> (i32, i32) {
    %c0_i32 = arith.constant 0 : i32
    %c0_i32_0 = arith.constant 0 : i32
    return %arg1, %c0_i32 : i32, i32
  }
  func.func @transform_3(%arg0: i32, %arg1: i32) -> (i32, i32) {
    %c0_i32 = arith.constant 0 : i32
    return %arg0, %arg1 : i32, i32
  }
  func.func @transform_4(%arg0: i32, %arg1: i32) -> (i32, i32) {
    %c0_i32 = arith.constant 0 : i32
    %c0_i32_0 = arith.constant 0 : i32
    return %arg0, %c0_i32 : i32, i32
  }
}

</mosaic_0001>

<llo_original>
// kernel: tpu_custom_call.1
$region0: #{tpu_custom_call.1}
  #allocation0 [shape = 'u32[]', space=smem, size = 0x4, offset = 0x4, fixed_abs, tag = 'smem constant byte address 0x4 - core index']
  #allocation1 [shape = 'u32[144,128]{1,0:T(1,128)}', space=vmem, size = 0x12000, scoped, tag = 'internal scratch']
  #allocation2 [shape = 'f32[8,128]{1,0:T(8,128)}', space=vmem, size = 0x1000, scoped, tag = 'scratch operand']
  %s0 = inlined_call_operand.hbm [shape: f32[8,128], index: 0, kind: input, shape index: {}]
  %s1 = inlined_call_operand.hbm [shape: f32[128,128], index: 1, kind: input, shape index: {}]
  %s2 = inlined_call_operand.hbm [shape: f32[384,128], index: 2, kind: input, shape index: {}]
  %s3 = inlined_call_operand.hbm [shape: f32[8,128], index: 3, kind: output, shape index: {0}]
  %s4 = inlined_call_operand.hbm [shape: f32[8,128], index: 4, kind: output, shape index: {1}]
  %5 = xla_tuple %s3, %s4
  %s6 = sld [smem:[#allocation0]]
  $region46: #{tpu_custom_call.1} parent=0
    _
  %s8 = ssub.s32 1, %s6
  %s9 = scalar_select 0, %s8, %s6
  $region1: #{tpu_custom_call.1} parent=0
    #allocation3 [shape = 'u8[4096]{0}', space=vmem, size = 0x1000, scoped, tag = 'input window, operand 0, single buffered']
    #allocation4 [shape = 's32[1]{0}', space=sflag, size = 0x4, scoped, tag = 'scoped memory for tpu_custom_call.1']
    #allocation5 [shape = 's32[1]{0}', space=sflag, size = 0x4, scoped, tag = 'scoped memory for tpu_custom_call.1']
    #allocation6 [shape = 'u8[65536]{0}', space=vmem, size = 0x10000, scoped, tag = 'input window, operand 1, single buffered']
    #allocation7 [shape = 's32[1]{0}', space=sflag, size = 0x4, scoped, tag = 'scoped memory for tpu_custom_call.1']
    #allocation8 [shape = 'u8[196608]{0}', space=vmem, size = 0x30000, scoped, tag = 'input window, operand 2, single buffered']
    #allocation9 [shape = 'u8[4096]{0}', space=vmem, size = 0x1000, scoped, tag = 'output window, operand 0, single buffered']
    #allocation10 [shape = 'u8[4096]{0}', space=vmem, size = 0x1000, scoped, tag = 'output window, operand 1, single buffered']
    #allocation11 [shape = 's32[1]{0}', space=sflag, size = 0x4, scoped, tag = 'scoped memory for tpu_custom_call.1']
    %10 = vsyncpa [#allocation4], 0
    %11 = vsyncpa [#allocation7], 0
    %12 = vsyncpa [#allocation5], 0
    %13 = vsyncpa [#allocation11], 0
    // Predicated region
    $region2: #{tpu_custom_call.1} parent=1 // pred_check
      _
    $region3: #{tpu_custom_call.1} parent=1 // pred_check_branch
      %15 = sbr.rel (0) target = $region5
    $region4: #{tpu_custom_call.1} parent=1 // pred_region
      %s17 = ssub.s32 128, 128
      %18 = vsyncadd [#allocation4], %s17
      %s20 = sshll.u32 [#allocation3], 4
      %s21 = int_to_ptr.vmem [resolvable:$true] %s20
      %23 = dma.hbm_to_vmem [thread:$0]  %s0, 128, %s21, [#allocation4]
    $region5: #{tpu_custom_call.1} parent=1 // pred_fallthru
      _
    // Predicated region
    $region6: #{tpu_custom_call.1} parent=1 // pred_check
      _
    $region7: #{tpu_custom_call.1} parent=1 // pred_check_branch
      %25 = sbr.rel (0) target = $region9
    $region8: #{tpu_custom_call.1} parent=1 // pred_region
      %s27 = ssub.s32 2048, 2048
      %28 = vsyncadd [#allocation7], %s27
      %s29 = sshll.u32 [#allocation6], 4
      %s30 = int_to_ptr.vmem [resolvable:$true] %s29
      %35 = dma.hbm_to_vmem [thread:$0]  %s1, 2048, %s30, [#allocation7], 128, 128, 8
    $region9: #{tpu_custom_call.1} parent=1 // pred_fallthru
      _
    // Predicated region
    $region10: #{tpu_custom_call.1} parent=1 // pred_check
      _
    $region11: #{tpu_custom_call.1} parent=1 // pred_check_branch
      %37 = sbr.rel (0) target = $region13
    $region12: #{tpu_custom_call.1} parent=1 // pred_region
      %s39 = ssub.s32 6144, 6144
      %40 = vsyncadd [#allocation7], %s39
      %s41 = sshll.u32 [#allocation8], 4
      %s42 = int_to_ptr.vmem [resolvable:$true] %s41
      %47 = dma.hbm_to_vmem [thread:$0]  %s2, 6144, %s42, [#allocation7], 128, 128, 8
    $region13: #{tpu_custom_call.1} parent=1 // pred_fallthru
      _
    // Predicated region
    $region14: #{tpu_custom_call.1} parent=1 // pred_check
      _
    $region15: #{tpu_custom_call.1} parent=1 // pred_check_branch
      %49 = sbr.rel (0) target = $region17
    $region16: #{tpu_custom_call.1} parent=1 // pred_region
      %50 = dma.done [#allocation4], 128
    $region17: #{tpu_custom_call.1} parent=1 // pred_fallthru
      _
    // Predicated region
    $region18: #{tpu_custom_call.1} parent=1 // pred_check
      _
    $region19: #{tpu_custom_call.1} parent=1 // pred_check_branch
      %52 = sbr.rel (0) target = $region21
    $region20: #{tpu_custom_call.1} parent=1 // pred_region
      %53 = dma.done [#allocation7], 2048
    $region21: #{tpu_custom_call.1} parent=1 // pred_fallthru
      _
    // Predicated region
    $region22: #{tpu_custom_call.1} parent=1 // pred_check
      _
    $region23: #{tpu_custom_call.1} parent=1 // pred_check_branch
      %55 = sbr.rel (0) target = $region25
    $region24: #{tpu_custom_call.1} parent=1 // pred_region
      %56 = dma.done [#allocation7], 6144
    $region25: #{tpu_custom_call.1} parent=1 // pred_fallthru
      _
    %p57 = scmp.eq.s32.totalorder 0, 0
    // Predicated region
    $region26: #{tpu_custom_call.1} parent=1 // pred_check
      %p58 = pneg %p57
    $region27: #{tpu_custom_call.1} parent=1 // pred_check_branch
      %60 = sbr.rel (%p58) target = $region29
    $region28: #{tpu_custom_call.1} parent=1 // pred_region
      %v61 = vld [vmem:[#allocation3] sm:$0xff]
      %v62 = vld [vmem:[#allocation6] sm:$0xff]
      %v63 = vld [vmem:[#allocation6 + $0x8] sm:$0xff]
      %v64 = vld [vmem:[#allocation6 + $0x10] sm:$0xff]
      %v65 = vld [vmem:[#allocation6 + $0x18] sm:$0xff]
      %v66 = vld [vmem:[#allocation6 + $0x20] sm:$0xff]
      %v67 = vld [vmem:[#allocation6 + $0x28] sm:$0xff]
      %v68 = vld [vmem:[#allocation6 + $0x30] sm:$0xff]
      %v69 = vld [vmem:[#allocation6 + $0x38] sm:$0xff]
      %v70 = vld [vmem:[#allocation6 + $0x40] sm:$0xff]
      %v71 = vld [vmem:[#allocation6 + $0x48] sm:$0xff]
      %v72 = vld [vmem:[#allocation6 + $0x50] sm:$0xff]
      %v73 = vld [vmem:[#allocation6 + $0x58] sm:$0xff]
      %v74 = vld [vmem:[#allocation6 + $0x60] sm:$0xff]
      %v75 = vld [vmem:[#allocation6 + $0x68] sm:$0xff]
      %v76 = vld [vmem:[#allocation6 + $0x70] sm:$0xff]
      %v77 = vld [vmem:[#allocation6 + $0x78] sm:$0xff]
      %78 = vmatprep.subr.mxu0 0.0
      %79 = vmatpush1.msra.mxu0 %v62
      %80 = vmatprep.subr.mxu0 0.0
      %81 = vmatpush1.msra.mxu0 %v63
      %82 = vmatprep.subr.mxu0 0.0
      %83 = vmatpush1.msra.mxu0 %v64
      %84 = vmatprep.subr.mxu0 0.0
      %85 = vmatpush1.msra.mxu0 %v65
      %86 = vmatprep.subr.mxu0 0.0
      %87 = vmatpush1.msra.mxu0 %v66
      %88 = vmatprep.subr.mxu0 0.0
      %89 = vmatpush1.msra.mxu0 %v67
      %90 = vmatprep.subr.mxu0 0.0
      %91 = vmatpush1.msra.mxu0 %v68
      %92 = vmatprep.subr.mxu0 0.0
      %93 = vmatpush1.msra.mxu0 %v69
      %94 = vmatprep.subr.mxu0 0.0
      %95 = vmatpush1.msra.mxu0 %v70
      %96 = vmatprep.subr.mxu0 0.0
      %97 = vmatpush1.msra.mxu0 %v71
      %98 = vmatprep.subr.mxu0 0.0
      %99 = vmatpush1.msra.mxu0 %v72
      %100 = vmatprep.subr.mxu0 0.0
      %101 = vmatpush1.msra.mxu0 %v73
      %102 = vmatprep.subr.mxu0 0.0
      %103 = vmatpush1.msra.mxu0 %v74
      %104 = vmatprep.subr.mxu0 0.0
      %105 = vmatpush1.msra.mxu0 %v75
      %106 = vmatprep.subr.mxu0 0.0
      %107 = vmatpush1.msra.mxu0 %v76
      %108 = vmatprep.subr.mxu0 0.0
      %109 = vmatpush1.msra.mxu0 %v77
      %110 = vmatprep.subr.mxu0 0.0
      %111 = vmatpush1.msra.mxu0 0.0
      %112 = vmatprep.subr.mxu0 0.0
      %113 = vmatpush1.msra.mxu0 0.0
      %114 = vmatprep.subr.mxu0 0.0
      %115 = vmatpush1.msra.mxu0 0.0
      %116 = vmatprep.subr.mxu0 0.0
      %117 = vmatpush1.msra.mxu0 0.0
      %118 = vmatprep.subr.mxu0 0.0
      %119 = vmatpush1.msra.mxu0 0.0
      %120 = vmatprep.subr.mxu0 0.0
      %121 = vmatpush1.msra.mxu0 0.0
      %122 = vmatprep.subr.mxu0 0.0
      %123 = vmatpush1.msra.mxu0 0.0
      %124 = vmatprep.subr.mxu0 0.0
      %125 = vmatpush1.msra.mxu0 0.0
      %126 = vmatprep.subr.mxu0 0.0
      %127 = vmatpush1.msra.mxu0 0.0
      %128 = vmatprep.subr.mxu0 0.0
      %129 = vmatpush1.msra.mxu0 0.0
      %130 = vmatprep.subr.mxu0 0.0
      %131 = vmatpush1.msra.mxu0 0.0
      %132 = vmatprep.subr.mxu0 0.0
      %133 = vmatpush1.msra.mxu0 0.0
      %134 = vmatprep.subr.mxu0 0.0
      %135 = vmatpush1.msra.mxu0 0.0
      %136 = vmatprep.subr.mxu0 0.0
      %137 = vmatpush1.msra.mxu0 0.0
      %138 = vmatprep.subr.mxu0 0.0
      %139 = vmatpush1.msra.mxu0 0.0
      %140 = vmatprep.subr.mxu0 0.0
      %141 = vmatpush1.msra.mxu0 0.0
      %142 = vmatprep.mubr.f32.mxu0 0.0
      %143 = vmatmul.mubr.f32.gmra.mrb[0].mxu0 %v61
      %v144 = vpop.f32.mrb[0].mxu0
      %v145 = vadd.f32 0.0, %v144
      %v146 = vpop.f32.mrb[0].mxu0
      %147 = vdwg.mxu0
      %v148 = vmul.f32 %v145, %v145
      %149 = vadd.xlane.f32.xlu0 %v148
      %v150 = vpop.xlane.xlu0 %149
      %v151 = vmax.f32 %v150, 1e-24
      %v152 = vrsqrt.pop %v151
      %v153 = vmul.f32 %v145, %v152
      %154 = vst [vmem:[#allocation10] sm:$0xff] %v153
      %155 = vst [vmem:[#allocation2] sm:$0xff] %v153
    $region29: #{tpu_custom_call.1} parent=1 // pred_fallthru
      _
    %v156 = vld [vmem:[#allocation2] sm:$0xff]
    %v157 = vld [vmem:[#allocation8] sm:$0xff]
    %v158 = vld [vmem:[#allocation8 + $0x8] sm:$0xff]
    %v159 = vld [vmem:[#allocation8 + $0x10] sm:$0xff]
    %v160 = vld [vmem:[#allocation8 + $0x18] sm:$0xff]
    %v161 = vld [vmem:[#allocation8 + $0x20] sm:$0xff]
    %v162 = vld [vmem:[#allocation8 + $0x28] sm:$0xff]
    %v163 = vld [vmem:[#allocation8 + $0x30] sm:$0xff]
    %v164 = vld [vmem:[#allocation8 + $0x38] sm:$0xff]
    %v165 = vld [vmem:[#allocation8 + $0x40] sm:$0xff]
    %v166 = vld [vmem:[#allocation8 + $0x48] sm:$0xff]
    %v167 = vld [vmem:[#allocation8 + $0x50] sm:$0xff]
    %v168 = vld [vmem:[#allocation8 + $0x58] sm:$0xff]
    %v169 = vld [vmem:[#allocation8 + $0x60] sm:$0xff]
    %v170 = vld [vmem:[#allocation8 + $0x68] sm:$0xff]
    %v171 = vld [vmem:[#allocation8 + $0x70] sm:$0xff]
    %v172 = vld [vmem:[#allocation8 + $0x78] sm:$0xff]
    %v173 = vld [vmem:[#allocation8 + $0x80] sm:$0xff]
    %v174 = vld [vmem:[#allocation8 + $0x88] sm:$0xff]
    %v175 = vld [vmem:[#allocation8 + $0x90] sm:$0xff]
    %v176 = vld [vmem:[#allocation8 + $0x98] sm:$0xff]
    %v177 = vld [vmem:[#allocation8 + $0xa0] sm:$0xff]
    %v178 = vld [vmem:[#allocation8 + $0xa8] sm:$0xff]
    %v179 = vld [vmem:[#allocation8 + $0xb0] sm:$0xff]
    %v180 = vld [vmem:[#allocation8 + $0xb8] sm:$0xff]
    %v181 = vld [vmem:[#allocation8 + $0xc0] sm:$0xff]
    %v182 = vld [vmem:[#allocation8 + $0xc8] sm:$0xff]
    %v183 = vld [vmem:[#allocation8 + $0xd0] sm:$0xff]
    %v184 = vld [vmem:[#allocation8 + $0xd8] sm:$0xff]
    %v185 = vld [vmem:[#allocation8 + $0xe0] sm:$0xff]
    %v186 = vld [vmem:[#allocation8 + $0xe8] sm:$0xff]
    %v187 = vld [vmem:[#allocation8 + $0xf0] sm:$0xff]
    %v188 = vld [vmem:[#allocation8 + $0xf8] sm:$0xff]
    %v189 = vld [vmem:[#allocation8 + $0x100] sm:$0xff]
    %v190 = vld [vmem:[#allocation8 + $0x108] sm:$0xff]
    %v191 = vld [vmem:[#allocation8 + $0x110] sm:$0xff]
    %v192 = vld [vmem:[#allocation8 + $0x118] sm:$0xff]
    %v193 = vld [vmem:[#allocation8 + $0x120] sm:$0xff]
    %v194 = vld [vmem:[#allocation8 + $0x128] sm:$0xff]
    %v195 = vld [vmem:[#allocation8 + $0x130] sm:$0xff]
    %v196 = vld [vmem:[#allocation8 + $0x138] sm:$0xff]
    %v197 = vld [vmem:[#allocation8 + $0x140] sm:$0xff]
    %v198 = vld [vmem:[#allocation8 + $0x148] sm:$0xff]
    %v199 = vld [vmem:[#allocation8 + $0x150] sm:$0xff]
    %v200 = vld [vmem:[#allocation8 + $0x158] sm:$0xff]
    %v201 = vld [vmem:[#allocation8 + $0x160] sm:$0xff]
    %v202 = vld [vmem:[#allocation8 + $0x168] sm:$0xff]
    %v203 = vld [vmem:[#allocation8 + $0x170] sm:$0xff]
    %v204 = vld [vmem:[#allocation8 + $0x178] sm:$0xff]
    %205 = vmatprep.subr.mxu0 0.0
    %206 = vmatpush1.xpose.msra.mxu0 %v157
    %207 = vmatprep.subr.mxu0 0.0
    %208 = vmatpush1.xpose.msra.mxu0 %v158
    %209 = vmatprep.subr.mxu0 0.0
    %210 = vmatpush1.xpose.msra.mxu0 %v159
    %211 = vmatprep.subr.mxu0 0.0
    %212 = vmatpush1.xpose.msra.mxu0 %v160
    %213 = vmatprep.subr.mxu0 0.0
    %214 = vmatpush1.xpose.msra.mxu0 %v161
    %215 = vmatprep.subr.mxu0 0.0
    %216 = vmatpush1.xpose.msra.mxu0 %v162
    %217 = vmatprep.subr.mxu0 0.0
    %218 = vmatpush1.xpose.msra.mxu0 %v163
    %219 = vmatprep.subr.mxu0 0.0
    %220 = vmatpush1.xpose.msra.mxu0 %v164
    %221 = vmatprep.subr.mxu0 0.0
    %222 = vmatpush1.xpose.msra.mxu0 %v165
    %223 = vmatprep.subr.mxu0 0.0
    %224 = vmatpush1.xpose.msra.mxu0 %v166
    %225 = vmatprep.subr.mxu0 0.0
    %226 = vmatpush1.xpose.msra.mxu0 %v167
    %227 = vmatprep.subr.mxu0 0.0
    %228 = vmatpush1.xpose.msra.mxu0 %v168
    %229 = vmatprep.subr.mxu0 0.0
    %230 = vmatpush1.xpose.msra.mxu0 %v169
    %231 = vmatprep.subr.mxu0 0.0
    %232 = vmatpush1.xpose.msra.mxu0 %v170
    %233 = vmatprep.subr.mxu0 0.0
    %234 = vmatpush1.xpose.msra.mxu0 %v171
    %235 = vmatprep.subr.mxu0 0.0
    %236 = vmatpush1.xpose.msra.mxu0 %v172
    %237 = vmatprep.subr.mxu0 0.0
    %238 = vmatpush1.xpose.msra.mxu0 %v173
    %239 = vmatprep.subr.mxu0 0.0
    %240 = vmatpush1.xpose.msra.mxu0 %v174
    %241 = vmatprep.subr.mxu0 0.0
    %242 = vmatpush1.xpose.msra.mxu0 %v175
    %243 = vmatprep.subr.mxu0 0.0
    %244 = vmatpush1.xpose.msra.mxu0 %v176
    %245 = vmatprep.subr.mxu0 0.0
    %246 = vmatpush1.xpose.msra.mxu0 %v177
    %247 = vmatprep.subr.mxu0 0.0
    %248 = vmatpush1.xpose.msra.mxu0 %v178
    %249 = vmatprep.subr.mxu0 0.0
    %250 = vmatpush1.xpose.msra.mxu0 %v179
    %251 = vmatprep.subr.mxu0 0.0
    %252 = vmatpush1.xpose.msra.mxu0 %v180
    %253 = vmatprep.subr.mxu0 0.0
    %254 = vmatpush1.xpose.msra.mxu0 %v181
    %255 = vmatprep.subr.mxu0 0.0
    %256 = vmatpush1.xpose.msra.mxu0 %v182
    %257 = vmatprep.subr.mxu0 0.0
    %258 = vmatpush1.xpose.msra.mxu0 %v183
    %259 = vmatprep.subr.mxu0 0.0
    %260 = vmatpush1.xpose.msra.mxu0 %v184
    %261 = vmatprep.subr.mxu0 0.0
    %262 = vmatpush1.xpose.msra.mxu0 %v185
    %263 = vmatprep.subr.mxu0 0.0
    %264 = vmatpush1.xpose.msra.mxu0 %v186
    %265 = vmatprep.subr.mxu0 0.0
    %266 = vmatpush1.xpose.msra.mxu0 %v187
    %267 = vmatprep.subr.mxu0 0.0
    %268 = vmatpush1.xpose.msra.mxu0 %v188
    %269 = vmatprep.mubr.f32.mxu0 0.0
    %270 = vmatmul.mubr.f32.gmra.mrb[0].mxu0 %v156
    %v271 = vpop.f32.mrb[0].mxu0
    %v272 = vadd.f32 0.0, %v271
    %v273 = vpop.f32.mrb[0].mxu0
    %v274 = vadd.f32 0.0, %v273
    %275 = vdwg.mxu0
    %276 = vmatprep.subr.mxu0 0.0
    %277 = vmatpush1.xpose.msra.mxu0 %v189
    %278 = vmatprep.subr.mxu0 0.0
    %279 = vmatpush1.xpose.msra.mxu0 %v190
    %280 = vmatprep.subr.mxu0 0.0
    %281 = vmatpush1.xpose.msra.mxu0 %v191
    %282 = vmatprep.subr.mxu0 0.0
    %283 = vmatpush1.xpose.msra.mxu0 %v192
    %284 = vmatprep.subr.mxu0 0.0
    %285 = vmatpush1.xpose.msra.mxu0 %v193
    %286 = vmatprep.subr.mxu0 0.0
    %287 = vmatpush1.xpose.msra.mxu0 %v194
    %288 = vmatprep.subr.mxu0 0.0
    %289 = vmatpush1.xpose.msra.mxu0 %v195
    %290 = vmatprep.subr.mxu0 0.0
    %291 = vmatpush1.xpose.msra.mxu0 %v196
    %292 = vmatprep.subr.mxu0 0.0
    %293 = vmatpush1.xpose.msra.mxu0 %v197
    %294 = vmatprep.subr.mxu0 0.0
    %295 = vmatpush1.xpose.msra.mxu0 %v198
    %296 = vmatprep.subr.mxu0 0.0
    %297 = vmatpush1.xpose.msra.mxu0 %v199
    %298 = vmatprep.subr.mxu0 0.0
    %299 = vmatpush1.xpose.msra.mxu0 %v200
    %300 = vmatprep.subr.mxu0 0.0
    %301 = vmatpush1.xpose.msra.mxu0 %v201
    %302 = vmatprep.subr.mxu0 0.0
    %303 = vmatpush1.xpose.msra.mxu0 %v202
    %304 = vmatprep.subr.mxu0 0.0
    %305 = vmatpush1.xpose.msra.mxu0 %v203
    %306 = vmatprep.subr.mxu0 0.0
    %307 = vmatpush1.xpose.msra.mxu0 %v204
    %308 = vmatprep.subr.mxu0 0.0
    %309 = vmatpush1.xpose.msra.mxu0 0.0
    %310 = vmatprep.subr.mxu0 0.0
    %311 = vmatpush1.xpose.msra.mxu0 0.0
    %312 = vmatprep.subr.mxu0 0.0
    %313 = vmatpush1.xpose.msra.mxu0 0.0
    %314 = vmatprep.subr.mxu0 0.0
    %315 = vmatpush1.xpose.msra.mxu0 0.0
    %316 = vmatprep.subr.mxu0 0.0
    %317 = vmatpush1.xpose.msra.mxu0 0.0
    %318 = vmatprep.subr.mxu0 0.0
    %319 = vmatpush1.xpose.msra.mxu0 0.0
    %320 = vmatprep.subr.mxu0 0.0
    %321 = vmatpush1.xpose.msra.mxu0 0.0
    %322 = vmatprep.subr.mxu0 0.0
    %323 = vmatpush1.xpose.msra.mxu0 0.0
    %324 = vmatprep.subr.mxu0 0.0
    %325 = vmatpush1.xpose.msra.mxu0 0.0
    %326 = vmatprep.subr.mxu0 0.0
    %327 = vmatpush1.xpose.msra.mxu0 0.0
    %328 = vmatprep.subr.mxu0 0.0
    %329 = vmatpush1.xpose.msra.mxu0 0.0
    %330 = vmatprep.subr.mxu0 0.0
    %331 = vmatpush1.xpose.msra.mxu0 0.0
    %332 = vmatprep.subr.mxu0 0.0
    %333 = vmatpush1.xpose.msra.mxu0 0.0
    %334 = vmatprep.subr.mxu0 0.0
    %335 = vmatpush1.xpose.msra.mxu0 0.0
    %336 = vmatprep.subr.mxu0 0.0
    %337 = vmatpush1.xpose.msra.mxu0 0.0
    %338 = vmatprep.subr.mxu0 0.0
    %339 = vmatpush1.xpose.msra.mxu0 0.0
    %340 = vmatprep.mubr.f32.mxu0 0.0
    %341 = vmatmul.mubr.f32.gmra.mrb[0].mxu0 %v156
    %v342 = vpop.f32.mrb[0].mxu0
    %v343 = vadd.f32 0.0, %v342
    %v344 = vpop.f32.mrb[0].mxu0
    %345 = vdwg.mxu0
    %v346 = vmax.f32 %v272, %v274
    %v347 = vmax.f32 %v346, %v343
    %348 = vst [vmem:[#allocation9] sm:$0xff] %v347
    // Predicated region
    $region30: #{tpu_custom_call.1} parent=1 // pred_check
      _
    $region31: #{tpu_custom_call.1} parent=1 // pred_check_branch
      %350 = sbr.rel (0) target = $region33
    $region32: #{tpu_custom_call.1} parent=1 // pred_region
      %s352 = ssub.s32 128, 128
      %353 = vsyncadd [#allocation5], %s352
      %s355 = sshll.u32 [#allocation9], 4
      %s356 = int_to_ptr.vmem [resolvable:$true] %s355
      %358 = dma.vmem_to_hbm [thread:$0]  %s356, 128, %s3, [#allocation5]
    $region33: #{tpu_custom_call.1} parent=1 // pred_fallthru
      _
    // Predicated region
    $region34: #{tpu_custom_call.1} parent=1 // pred_check
      _
    $region35: #{tpu_custom_call.1} parent=1 // pred_check_branch
      %360 = sbr.rel (0) target = $region37
    $region36: #{tpu_custom_call.1} parent=1 // pred_region
      %s362 = ssub.s32 128, 128
      %363 = vsyncadd [#allocation11], %s362
      %s365 = sshll.u32 [#allocation10], 4
      %s366 = int_to_ptr.vmem [resolvable:$true] %s365
      %368 = dma.vmem_to_hbm [thread:$0]  %s366, 128, %s4, [#allocation11]
    $region37: #{tpu_custom_call.1} parent=1 // pred_fallthru
      _
    // Predicated region
    $region38: #{tpu_custom_call.1} parent=1 // pred_check
      _
    $region39: #{tpu_custom_call.1} parent=1 // pred_check_branch
      %370 = sbr.rel (0) target = $region41
    $region40: #{tpu_custom_call.1} parent=1 // pred_region
      %371 = dma.done [#allocation5], 128
    $region41: #{tpu_custom_call.1} parent=1 // pred_fallthru
      _
    // Predicated region
    $region42: #{tpu_custom_call.1} parent=1 // pred_check
      _
    $region43: #{tpu_custom_call.1} parent=1 // pred_check_branch
      %373 = sbr.rel (0) target = $region45
    $region44: #{tpu_custom_call.1} parent=1 // pred_region
      %374 = dma.done [#allocation11], 128
    $region45: #{tpu_custom_call.1} parent=1 // pred_fallthru
      _
    %375 = vsyncpa [#allocation4], 1
    %376 = vsyncpa [#allocation7], 1
    %377 = vsyncpa [#allocation5], 1
    %378 = vsyncpa [#allocation11], 1

</llo_original>
